<compile_context>
chip_gen: v7x
topology: tpu7x:2x2x1
jax: 0.10.0
libtpu: 0.0.40
codegen_flags: <defaults>
</compile_context>

<pallas_src>
import jax
import jax.numpy as jnp
from jax import lax
from jax.experimental import pallas as pl
from jax.experimental.pallas import tpu as pltpu

LANE = 128
SUBLANE = 8


def _round_up(x, m):
    return ((x + m - 1) // m) * m


def _vmem_capacity_bytes():
    try:
        cap = int(pltpu.get_tpu_info().vmem_capacity_bytes)
        if cap > 0:
            return cap
    except Exception:
        pass
    return 64 << 20          # conservative fallback (v7x physical VMEM per core)


def _num_tensorcores():
    try:
        dev = jax.devices()[0]
        for attr in ("num_cores", "core_count"):
            v = getattr(dev, attr, None)
            if isinstance(v, int) and 1 <= v <= 16:
                return v
    except Exception:
        pass
    return 1


# --------------------------------------------------------------------------- #
# Kernels
# --------------------------------------------------------------------------- #
def _conv_block(x, w_ref, b_ref, out_ref, th, r):
    """x: (th + r - 1, wp, K) bf16 values.  Writes out_ref[0] = (th, wp, cop)."""
    rows, wp, k = x.shape
    acc = None
    for dh in range(r):                           # r is 1 or 3 (static)
        lhs = x[dh:dh + th].reshape(th * wp, k)   # free view: wp % 8 == 0
        d = jnp.dot(lhs, w_ref[dh], preferred_element_type=jnp.float32)
        acc = d if acc is None else acc + d
    y = jnp.maximum(acc + b_ref[...], 0.0)        # bias + ReLU in f32
    out_ref[0] = y.reshape(th, wp, -1).astype(out_ref.dtype)


def _make_block_kernel(th, r):
    """Auto-pipelined path (disjoint row tiles, or whole-image block with halo)."""
    def kernel(xs_ref, w_ref, b_ref, out_ref):
        _conv_block(xs_ref[0], w_ref, b_ref, out_ref, th, r)
    return kernel


def _make_dma_kernel(th, r, t_tiles):
    """3-tap path with row tiling: overlapping (th+2)-row windows are DMA'd from
    HBM into a double-buffered VMEM scratch; the next tile is prefetched while
    the current one computes (row-tile axis must be sequential per batch)."""
    rows = th + r - 1

    def kernel(xs_hbm, w_ref, b_ref, out_ref, xbuf, sem):
        nidx = pl.program_id(0)
        tidx = pl.program_id(1)

        def start(ni, ti, slot):
            pltpu.make_async_copy(xs_hbm.at[ni, pl.ds(ti * th, rows)],
                                  xbuf.at[slot], sem.at[slot]).start()

        def wait(slot):
            pltpu.make_async_copy(xs_hbm.at[0, pl.ds(0, rows)],
                                  xbuf.at[slot], sem.at[slot]).wait()

        # Prime the pipeline at the first row tile of each batch element.
        @pl.when(tidx == 0)
        def _():
            start(nidx, 0, 0)

        slot = tidx % 2
        wait(slot)

        # Prefetch the next overlapping row window while computing this one.
        @pl.when(tidx + 1 < t_tiles)
        def _():
            start(nidx, tidx + 1, 1 - slot)

        _conv_block(xbuf[slot], w_ref, b_ref, out_ref, th, r)

    return kernel


# --------------------------------------------------------------------------- #
# Host-side helpers
# --------------------------------------------------------------------------- #
def _pick_row_tile(h, wp, k, cop, r, n_batch, budget, allow_core_split):
    """Largest divisor of H whose (honestly accounted) VMEM need fits `budget`;
    on multi-TC chips optionally split further so the grid has >= 2*cores steps."""
    halo = r - 1

    def vmem_need(d):
        x_b = 2 * (d + halo) * wp * k * 2        # input: 2 buffers, bf16
        o_b = 2 * d * wp * cop * 2               # output: 2 buffers, bf16
        w_b = 2 * r * k * cop * 2 + 4 * cop      # weights (2 buffers) + bias
        return x_b + o_b + w_b

    divisors = [d for d in range(1, h + 1) if h % d == 0]
    fits = [d for d in divisors if vmem_need(d) <= budget]
    if not fits:
        return 1
    tile = max(fits)                 # fewest grid steps: best on single-TC v5e/v6e
    if allow_core_split:
        cores = _num_tensorcores()
        if cores > 1:
            min_grid = 2 * cores
            if n_batch * (h // tile) < min_grid:
                cands = [d for d in fits
                         if n_batch * (h // d) >= min_grid and d * wp >= 256]
                if not cands:
                    cands = [d for d in fits if n_batch * (h // d) >= min_grid]
                if cands:
                    tile = max(cands)
    return tile


def fold_params(params):
    """Fold the three conv branches into one 3x3 conv (HWIO weight, bias)."""
    (w1, b1), (w2, b2), (w3, b3) = params           # OIHW weights
    w_eff = w1                                       # (O, I, 3, 3)
    w_eff = w_eff.at[:, :, 1, :].add(w2[:, :, 0, :])     # (1,3) conv -> row kh=1
    w_eff = w_eff.at[:, :, :, 1].add(w3[:, :, :, 0])     # (3,1) conv -> col kw=1
    b_eff = b1 + b2 + b3
    return jnp.transpose(w_eff, (2, 3, 1, 0)), b_eff     # HWIO, (Cout,)


def acblock_forward(x_nchw, params, row_tile=None, channels_last=False):
    """x_nchw: (N, Cin, H, W) float32.  Returns (N, Cout, H, W) float32
    (or the raw lane-padded NHWC bf16 kernel output with channels_last=True)."""
    w_eff, b_eff = fold_params(params)           # (3,3,Cin,Cout), (Cout,)
    n, cin, h, w = x_nchw.shape
    cout = w_eff.shape[-1]
    cop = _round_up(cout, LANE)
    wp = _round_up(w, SUBLANE)                   # keeps in-kernel views free

    # Pad the channel axis AFTER folding taps into K (review item #1).
    k9 = _round_up(9 * cin, LANE)
    k3 = _round_up(3 * cin, LANE)
    use_im2col9 = k9 <= k3          # small Cin: the full im2col costs no extra K
    r = 1 if use_im2col9 else 3     # row taps handled inside the kernel
    k_dim = k9 if use_im2col9 else k3

    # ---- weights / bias: fp32 fold, zero-pad, bf16 for the MXU ----
    if use_im2col9:
        w_flat = w_eff.reshape(9 * cin, cout)               # K = (dh*3+dw)*Cin + c
        w_k = jnp.zeros((1, k_dim, cop), jnp.float32)
        w_k = w_k.at[0, :9 * cin, :cout].set(w_flat)
    else:
        w_flat = w_eff.reshape(3, 3 * cin, cout)             # [dh, dw*Cin + c, o]
        w_k = jnp.zeros((3, k_dim, cop), jnp.float32)
        w_k = w_k.at[:, :3 * cin, :cout].set(w_flat)
    w_k = w_k.astype(jnp.bfloat16)
    b_k = jnp.zeros((1, cop), jnp.float32).at[0, :cout].set(b_eff)

    # ---- input: NCHW -> NHWC, "same" pad (+ W padded to wp), bf16, tap fold ----
    x = jnp.transpose(x_nchw, (0, 2, 3, 1))
    xpad = jnp.pad(x, ((0, 0), (1, 1), (1, wp - w + 1), (0, 0))).astype(jnp.bfloat16)
    if use_im2col9:
        taps = [xpad[:, dh:dh + h, dw:dw + wp, :]
                for dh in range(3) for dw in range(3)]
        xs = jnp.concatenate(taps, axis=-1)                   # (N, H,   wp, 9*Cin)
        xs = jnp.pad(xs, ((0, 0), (0, 0), (0, 0), (0, k_dim - 9 * cin)))
    else:
        taps = [xpad[:, :, dw:dw + wp, :] for dw in range(3)]
        xs = jnp.concatenate(taps, axis=-1)                   # (N, H+2, wp, 3*Cin)
        xs = jnp.pad(xs, ((0, 0), (0, 0), (0, 0), (0, k_dim - 3 * cin)))

    # ---- row tiling: generation-aware VMEM budget ----
    cap = _vmem_capacity_bytes()
    budget = int(cap * 0.55)
    vmem_limit = min(int(cap * 0.75), 112 << 20)
    if row_tile is None:
        th = _pick_row_tile(h, wp, k_dim, cop, r, n, budget,
                            allow_core_split=use_im2col9)
    else:
        th = row_tile
    assert h % th == 0, "row_tile must divide H"
    t = h // th

    w_spec = pl.BlockSpec((r, k_dim, cop), lambda i, j: (0, 0, 0))
    b_spec = pl.BlockSpec((1, cop), lambda i, j: (0, 0))
    o_spec = pl.BlockSpec((1, th, wp, cop), lambda i, j: (i, j, 0, 0))
    out_shape = jax.ShapeDtypeStruct((n, h, wp, cop), jnp.bfloat16)

    if use_im2col9:
        # Disjoint row tiles (no halo): plain auto-pipelined BlockSpecs.
        x_spec = pl.BlockSpec((1, th, wp, k_dim), lambda i, j: (i, j, 0, 0))
        kernel = _make_block_kernel(th, r)
        scratch = ()
        semantics = ("parallel", "parallel")
    elif th == h:
        # Whole-image block: the 2 halo rows live inside the single block.
        x_spec = pl.BlockSpec((1, h + 2, wp, k_dim), lambda i, j: (i, 0, 0, 0))
        kernel = _make_block_kernel(th, r)
        scratch = ()
        semantics = ("parallel", "arbitrary")
    else:
        # Overlapping row windows: manual double-buffered DMA from HBM
        # (no host-side halo stack).  The row-tile axis must stay sequential.
        x_spec = pl.BlockSpec(memory_space=pl.ANY)
        kernel = _make_dma_kernel(th, r, t)
        scratch = (pltpu.VMEM((2, th + 2, wp, k_dim), jnp.bfloat16),
                   pltpu.SemaphoreType.DMA((2,)))
        semantics = ("parallel", "arbitrary")

    out = pl.pallas_call(
        kernel,
        out_shape=out_shape,
        grid_spec=pltpu.PrefetchScalarGridSpec(
            num_scalar_prefetch=0,
            grid=(n, t),
            in_specs=[x_spec, w_spec, b_spec],
            out_specs=o_spec,
            scratch_shapes=scratch),
        compiler_params=pltpu.CompilerParams(
            dimension_semantics=semantics,
            vmem_limit_bytes=vmem_limit),
    )(xs, w_k, b_k)

    out = out[:, :, :w, :cout]                   # drop W / channel padding
    if channels_last:
        return out                               # NHWC bf16: no extra HBM pass
    return jnp.transpose(out, (0, 3, 1, 2)).astype(jnp.float32)


# --------------------------------------------------------------------------- #
# Init + pure-JAX reference (faithful to the PyTorch module)
# --------------------------------------------------------------------------- #
def init_params(key, in_channels, out_channels):
    ks = jax.random.split(key, 6)

    def conv_init(kw, kb, shape):
        fan_in = shape[1] * shape[2] * shape[3]
        bound = 1.0 / (fan_in ** 0.5)
        wgt = jax.random.uniform(kw, shape, jnp.float32, -bound, bound)
        bias = jax.random.uniform(kb, (shape[0],), jnp.float32, -bound, bound)
        return wgt, bias

    c1 = conv_init(ks[0], ks[1], (out_channels, in_channels, 3, 3))
    c2 = conv_init(ks[2], ks[3], (out_channels, in_channels, 1, 3))
    c3 = conv_init(ks[4], ks[5], (out_channels, in_channels, 3, 1))
    return c1, c2, c3


def acblock_reference(x_nchw, params):
    (w1, b1), (w2, b2), (w3, b3) = params
    dn = ("NCHW", "OIHW", "NCHW")
    y1 = lax.conv_general_dilated(x_nchw, w1, (1, 1), ((1, 1), (1, 1)),
                                  dimension_numbers=dn) + b1[None, :, None, None]
    y2 = lax.conv_general_dilated(x_nchw, w2, (1, 1), ((0, 0), (1, 1)),
                                  dimension_numbers=dn) + b2[None, :, None, None]
    y3 = lax.conv_general_dilated(x_nchw, w3, (1, 1), ((1, 1), (0, 0)),
                                  dimension_numbers=dn) + b3[None, :, None, None]
    return jnp.maximum(y1 + y2 + y3, 0.0)


if __name__ == "__main__":
    key = jax.random.PRNGKey(0)
    kx1, kp1, kx2, kp2, kx3, kp3 = jax.random.split(key, 6)

    fwd = jax.jit(acblock_forward, static_argnames=("row_tile", "channels_last"))

    # Config 1: batch=2, channels=4, spatial 16x16  (im2col path, K=128).
    N, C, H, W = 2, 4, 16, 16
    x1 = jax.random.normal(kx1, (N, C, H, W), jnp.float32)
    p1 = init_params(kp1, C, C)
    ref1 = jax.block_until_ready(acblock_reference(x1, p1))
    y1 = jax.block_until_ready(fwd(x1, p1))
    assert y1.shape == (N, C, H, W)
    e1 = float(jnp.max(jnp.abs(y1 - ref1)))
    assert e1 < 5e-2, f"config1 error {e1}"

    # Same config, explicit row tiling (multi-step grid, disjoint im2col tiles).
    y1t = jax.block_until_ready(fwd(x1, p1, row_tile=8))
    e1t = float(jnp.max(jnp.abs(y1t - ref1)))
    assert e1t < 5e-2, f"config1 tiled error {e1t}"

    # Config 2: Cin != Cout and W not a multiple of 8 (exercises W/C padding + crop).
    N2, CI2, CO2, H2, W2 = 1, 3, 5, 8, 12
    x2 = jax.random.normal(kx2, (N2, CI2, H2, W2), jnp.float32)
    p2 = init_params(kp2, CI2, CO2)
    y2 = jax.block_until_ready(fwd(x2, p2))
    e2 = float(jnp.max(jnp.abs(y2 - acblock_reference(x2, p2))))
    assert y2.shape == (N2, CO2, H2, W2)
    assert e2 < 5e-2, f"config2 error {e2}"

    # Config 3: larger Cin -> 3-row-tap path, whole-image block (halo inside block).
    N3, CI3, CO3, H3, W3 = 1, 40, 8, 8, 16
    x3 = jax.random.normal(kx3, (N3, CI3, H3, W3), jnp.float32)
    p3 = init_params(kp3, CI3, CO3)
    ref3 = jax.block_until_ready(acblock_reference(x3, p3))
    y3 = jax.block_until_ready(fwd(x3, p3))
    assert y3.shape == (N3, CO3, H3, W3)
    e3 = float(jnp.max(jnp.abs(y3 - ref3)))
    assert e3 < 5e-2, f"config3 error {e3}"

    # Config 4: 3-tap path with row tiling -> manual overlapping-window DMA kernel.
    y4 = jax.block_until_ready(fwd(x3, p3, row_tile=4))
    e4 = float(jnp.max(jnp.abs(y4 - ref3)))
    assert e4 < 5e-2, f"config4 error {e4}"

    print("KERNEL_OK")
</pallas_src>

<mosaic_0001>
module attributes {stable_mosaic.version = 11 : i64} {
  func.func @kernel(%arg0: i32, %arg1: i32, %arg2: memref<1x16x16x128xbf16, #tpu.memory_space<vmem>>, %arg3: memref<1x128x128xbf16, #tpu.memory_space<vmem>>, %arg4: memref<1x128xf32, #tpu.memory_space<vmem>>, %arg5: memref<1x16x16x128xbf16, #tpu.memory_space<vmem>>) attributes {dimension_semantics = [#tpu.dimension_semantics<parallel>, #tpu.dimension_semantics<parallel>], iteration_bounds = array<i64: 2, 1>, scalar_prefetch = 0 : i64, scratch_operands = 0 : i64, tpu.core_type = #tpu.core_type<tc>, window_params = [{transform_indices = @transform_0, window_bounds = array<i64: 1, 16, 16, 128>}, {pipeline_mode = #tpu.pipeline_mode<synchronous>, transform_indices = @transform_1, window_bounds = array<i64: 1, 128, 128>}, {pipeline_mode = #tpu.pipeline_mode<synchronous>, transform_indices = @transform_2, window_bounds = array<i64: 1, 128>}, {transform_indices = @transform_3, window_bounds = array<i64: 1, 16, 16, 128>}]} {
    %c0 = arith.constant 0 : index
    %c0_0 = arith.constant 0 : index
    %c0_1 = arith.constant 0 : index
    %c0_2 = arith.constant 0 : index
    %0 = vector.load %arg2[%c0, %c0_0, %c0_1, %c0_2] : memref<1x16x16x128xbf16, #tpu.memory_space<vmem>>, vector<1x16x16x128xbf16>
    %1 = vector.shape_cast %0 : vector<1x16x16x128xbf16> to vector<16x16x128xbf16>
    %2 = vector.shape_cast %1 : vector<16x16x128xbf16> to vector<256x128xbf16>
    %c0_3 = arith.constant 0 : index
    %c0_4 = arith.constant 0 : index
    %c0_5 = arith.constant 0 : index
    %3 = vector.load %arg3[%c0_3, %c0_4, %c0_5] : memref<1x128x128xbf16, #tpu.memory_space<vmem>>, vector<1x128x128xbf16>
    %4 = vector.shape_cast %3 : vector<1x128x128xbf16> to vector<128x128xbf16>
    %cst = arith.constant dense<0.000000e+00> : vector<256x128xf32>
    %5 = tpu.matmul %2, %4, %cst {dimension_numbers = #tpu.dot_dimension_numbers<[1], [0], [0], [1], [0, 0, 1, 1], [], []>} : vector<256x128xbf16>, vector<128x128xbf16>, vector<256x128xf32> -> vector<256x128xf32>
    %c0_6 = arith.constant 0 : index
    %c0_7 = arith.constant 0 : index
    %6 = vector.load %arg4[%c0_6, %c0_7] : memref<1x128xf32, #tpu.memory_space<vmem>>, vector<1x128xf32>
    %7 = vector.broadcast %6 : vector<1x128xf32> to vector<256x128xf32>
    %8 = arith.addf %5, %7 : vector<256x128xf32>
    %cst_8 = arith.constant 0.000000e+00 : f32
    %9 = vector.broadcast %cst_8 : f32 to vector<256x128xf32>
    %10 = arith.maximumf %8, %9 : vector<256x128xf32>
    %11 = vector.shape_cast %10 : vector<256x128xf32> to vector<16x16x128xf32>
    %12 = arith.truncf %11 : vector<16x16x128xf32> to vector<16x16x128xbf16>
    %c0_9 = arith.constant 0 : index
    %c0_10 = arith.constant 0 : index
    %c0_11 = arith.constant 0 : index
    %c0_12 = arith.constant 0 : index
    %13 = vector.load %arg5[%c0_9, %c0_10, %c0_11, %c0_12] : memref<1x16x16x128xbf16, #tpu.memory_space<vmem>>, vector<1x16x16x128xbf16>
    %14 = vector.shape_cast %13 : vector<1x16x16x128xbf16> to vector<16x16x128xbf16>
    %15 = vector.shape_cast %12 : vector<16x16x128xbf16> to vector<1x16x16x128xbf16>
    tpu.vector_store %arg5[%c0_9, %c0_10, %c0_11, %c0_12], %15 {strides = array<i32>} : memref<1x16x16x128xbf16, #tpu.memory_space<vmem>>, vector<1x16x16x128xbf16>,
    return
  }
  func.func @transform_0(%arg0: i32, %arg1: i32) -> (i32, i32, i32, i32) {
    %c0_i32 = arith.constant 0 : i32
    %c0_i32_0 = arith.constant 0 : i32
    %c0_i32_1 = arith.constant 0 : i32
    return %arg0, %arg1, %c0_i32, %c0_i32_0 : i32, i32, i32, i32
  }
  func.func @transform_1(%arg0: i32, %arg1: i32) -> (i32, i32, i32) {
    %c0_i32 = arith.constant 0 : i32
    %c0_i32_0 = arith.constant 0 : i32
    %c0_i32_1 = arith.constant 0 : i32
    %c0_i32_2 = arith.constant 0 : i32
    return %c0_i32, %c0_i32_0, %c0_i32_1 : i32, i32, i32
  }
  func.func @transform_2(%arg0: i32, %arg1: i32) -> (i32, i32) {
    %c0_i32 = arith.constant 0 : i32
    %c0_i32_0 = arith.constant 0 : i32
    %c0_i32_1 = arith.constant 0 : i32
    return %c0_i32, %c0_i32_0 : i32, i32
  }
  func.func @transform_3(%arg0: i32, %arg1: i32) -> (i32, i32, i32, i32) {
    %c0_i32 = arith.constant 0 : i32
    %c0_i32_0 = arith.constant 0 : i32
    %c0_i32_1 = arith.constant 0 : i32
    return %arg0, %arg1, %c0_i32, %c0_i32_0 : i32, i32, i32, i32
  }
}

</mosaic_0001>

<llo_original>
// kernel: acblock_forward.1
$region0: #{acblock_forward.1}
  #allocation0 [shape = 'u32[]', space=smem, size = 0x4, offset = 0x4, fixed_abs, tag = 'smem constant byte address 0x4 - core index']
  #allocation1 [shape = 'u32[144,128]{1,0:T(1,128)}', space=vmem, size = 0x12000, scoped, tag = 'internal scratch']
  %s0 = inlined_call_operand.vmem [shape: bf16[2,16,16,128], index: 0, kind: input, shape index: {}]
  %s1 = inlined_call_operand.vmem [shape: bf16[1,128,128], index: 1, kind: input, shape index: {}]
  %s2 = inlined_call_operand.vmem [shape: f32[1,128], index: 2, kind: input, shape index: {}]
  %s3 = inlined_call_operand.vmem [shape: bf16[2,16,16,128], index: 3, kind: output, shape index: {}]
  %s4 = sld [smem:[#allocation0]]
  $region45: #{acblock_forward.1} parent=0
    _
  %s6 = ssub.s32 1, %s4
  %s7 = scalar_select 0, %s6, %s4
  loop: start=0, step=1, limit=4
  $region2: #{acblock_forward.1} parent=0 // loop_pre_header
    _
  $region3: #{acblock_forward.1} parent=0 // loop_header
    %s9 = sphi 0, %s13
    %p10 = scmp.ge.s32.totalorder %s9, 4
    %s16 = sphi 0, %s28
    %s17 = sphi 0, %s24
    %s18 = sphi 0, %s16
    %s19 = sphi 0, %s17
    %s20 = sphi 0, %s18
    %s21 = sphi 0, %s19
    %s33 = sphi 0, %s35
    %s36 = sphi 0, %s33
    %s37 = sphi 0, %s36
    %s53 = sphi 0, %s37
    %s57 = sphi 0, %s57
    %s59 = sphi 0, %s57
    %s60 = sphi 0, %s59
    %s74 = sphi 0, %s60
    %s78 = sphi 0, %s78
    %s80 = sphi 0, %s78
    %s81 = sphi 0, %s80
    %s95 = sphi 0, %s81
    %s103 = sphi 0, %s105
    %s106 = sphi 0, %s103
    %s107 = sphi 0, %s106
    %s123 = sphi 0, %s107
  $region4: #{acblock_forward.1} parent=0 // loop_header_branch
    %12 = sbr.rel (%p10) target = $region8
  $region5: #{acblock_forward.1} parent=0 // loop_body
    %s14 = ssub.s32 %s9, 1
    %s15 = ssub.s32 %s9, 2
    %s22 = sadd.s32 1, %s17
    %p23 = scmp.ge.s32.totalorder %s22, 1
    %s24 = scalar_select %p23, 0, %s22
    %s25 = sadd.s32 1, %s16
    %s26 = scalar_select %p23, %s25, %s16
    %p27 = scmp.ge.s32.totalorder %s26, 2
    %s28 = scalar_select %p27, 0, %s26
    %s29 = ssub.s32 %s16, %s28
    %s30 = ssub.s32 %s17, %s24
    %s31 = sor.u32 %s29, %s30
    %p32 = scmp.eq.s32.totalorder %s31, 0
    %s34 = sadd.s32 %s33, 1
    %s35 = scalar_select %p32, %s33, %s34
    %p38 = pneg %p32
    %p39 = scmp.eq.s32.totalorder %s9, 1
    %p40 = por %p38, %p39
    %p41 = scmp.ne.s32.totalorder %s33, %s36
    %p42 = scmp.eq.s32.totalorder %s9, 0
    %p43 = por %p41, %p42
    %p44 = scmp.ne.s32.totalorder %s33, %s36
    %p45 = scmp.eq.s32.totalorder %s14, 1
    %p46 = por %p44, %p45
    %p47 = scmp.ne.s32.totalorder %s36, %s37
    %p48 = scmp.eq.s32.totalorder %s14, 0
    %p49 = por %p47, %p48
    %p50 = scmp.ne.s32.totalorder %s36, %s37
    %p51 = scmp.eq.s32.totalorder %s15, 1
    %p52 = por %p50, %p51
    %p54 = scmp.ne.s32.totalorder %s37, %s53
    %p55 = scmp.eq.s32.totalorder %s15, 0
    %p56 = por %p54, %p55
    %s58 = sadd.s32 %s57, 1
    %p61 = scmp.eq.s32.totalorder %s9, 1
    %p62 = scmp.ne.s32.totalorder %s57, %s59
    %p63 = scmp.eq.s32.totalorder %s9, 0
    %p64 = por %p62, %p63
    %p65 = scmp.ne.s32.totalorder %s57, %s59
    %p66 = scmp.eq.s32.totalorder %s14, 1
    %p67 = por %p65, %p66
    %p68 = scmp.ne.s32.totalorder %s59, %s60
    %p69 = scmp.eq.s32.totalorder %s14, 0
    %p70 = por %p68, %p69
    %p71 = scmp.ne.s32.totalorder %s59, %s60
    %p72 = scmp.eq.s32.totalorder %s15, 1
    %p73 = por %p71, %p72
    %p75 = scmp.ne.s32.totalorder %s60, %s74
    %p76 = scmp.eq.s32.totalorder %s15, 0
    %p77 = por %p75, %p76
    %s79 = sadd.s32 %s78, 1
    %p82 = scmp.eq.s32.totalorder %s9, 1
    %p83 = scmp.ne.s32.totalorder %s78, %s80
    %p84 = scmp.eq.s32.totalorder %s9, 0
    %p85 = por %p83, %p84
    %p86 = scmp.ne.s32.totalorder %s78, %s80
    %p87 = scmp.eq.s32.totalorder %s14, 1
    %p88 = por %p86, %p87
    %p89 = scmp.ne.s32.totalorder %s80, %s81
    %p90 = scmp.eq.s32.totalorder %s14, 0
    %p91 = por %p89, %p90
    %p92 = scmp.ne.s32.totalorder %s80, %s81
    %p93 = scmp.eq.s32.totalorder %s15, 1
    %p94 = por %p92, %p93
    %p96 = scmp.ne.s32.totalorder %s81, %s95
    %p97 = scmp.eq.s32.totalorder %s15, 0
    %p98 = por %p96, %p97
    %s99 = ssub.s32 %s16, %s28
    %s100 = ssub.s32 %s17, %s24
    %s101 = sor.u32 %s99, %s100
    %p102 = scmp.eq.s32.totalorder %s101, 0
    %s104 = sadd.s32 %s103, 1
    %s105 = scalar_select %p102, %s103, %s104
    %p108 = pneg %p102
    %p109 = scmp.eq.s32.totalorder %s9, 1
    %p110 = por %p108, %p109
    %p111 = scmp.ne.s32.totalorder %s103, %s106
    %p112 = scmp.eq.s32.totalorder %s9, 0
    %p113 = por %p111, %p112
    %p114 = scmp.ne.s32.totalorder %s103, %s106
    %p115 = scmp.eq.s32.totalorder %s14, 1
    %p116 = por %p114, %p115
    %p117 = scmp.ne.s32.totalorder %s106, %s107
    %p118 = scmp.eq.s32.totalorder %s14, 0
    %p119 = por %p117, %p118
    %p120 = scmp.ne.s32.totalorder %s106, %s107
    %p121 = scmp.eq.s32.totalorder %s15, 1
    %p122 = por %p120, %p121
    %p124 = scmp.ne.s32.totalorder %s107, %s123
    %p125 = scmp.eq.s32.totalorder %s15, 0
    %p126 = por %p124, %p125
    %p127 = scmp.le.s32.totalorder 1, %s9
    %p128 = scmp.lt.s32.totalorder %s9, 3
    %p129 = pnand %p127, %p128
    %p130 = pneg %p129
    // Predicated region
    $region9: #{acblock_forward.1} parent=5 // pred_check
      _
    $region10: #{acblock_forward.1} parent=5 // pred_check_branch
      %132 = sbr.rel (%p129) target = $region12
    $region11: #{acblock_forward.1} parent=5 // pred_region
      %s133 = ssub.s32 %s9, 1
      // Predicated region
      $region13: #{acblock_forward.1} parent=11 // pred_check
        %p134 = pneg %p70
      $region14: #{acblock_forward.1} parent=11 // pred_check_branch
        %136 = sbr.rel (%p134) target = $region16
      $region15: #{acblock_forward.1} parent=11 // pred_region
        _
      $region16: #{acblock_forward.1} parent=11 // pred_fallthru
        _
      // Predicated region
      $region17: #{acblock_forward.1} parent=11 // pred_check
        %p137 = pneg %p91
      $region18: #{acblock_forward.1} parent=11 // pred_check_branch
        %139 = sbr.rel (%p137) target = $region20
      $region19: #{acblock_forward.1} parent=11 // pred_region
        _
      $region20: #{acblock_forward.1} parent=11 // pred_fallthru
        _
    $region12: #{acblock_forward.1} parent=5 // pred_fallthru
      _
    %p140 = scmp.lt.s32.totalorder %s9, 2
    // Predicated region
    $region21: #{acblock_forward.1} parent=5 // pred_check
      %p141 = pneg %p140
    $region22: #{acblock_forward.1} parent=5 // pred_check_branch
      %143 = sbr.rel (%p141) target = $region24
    $region23: #{acblock_forward.1} parent=5 // pred_region
      // Predicated region
      $region25: #{acblock_forward.1} parent=23 // pred_check
        %p144 = pneg %p43
      $region26: #{acblock_forward.1} parent=23 // pred_check_branch
        %146 = sbr.rel (%p144) target = $region28
      $region27: #{acblock_forward.1} parent=23 // pred_region
        %s147 = smul.u32 16, %s17
        %p148 = scmp.lt.s32.totalorder %s16, 1
        %s149 = scalar_select %p148, %s16, 1
        %p150 = scmp.lt.s32.totalorder %s147, 15
        %s151 = scalar_select %p150, %s147, 15
        %s152 = smul.addr %s151, 2
        %s153 = smul.addr %s149, 32
        %s154 = sadd.s32 %s152, %s153
        %s155 = smul.addr %s154, 4
        %s156 = scalar_lea.vmem %s0, %s155
        %s157 = smul.u32 16, %s17
      $region28: #{acblock_forward.1} parent=23 // pred_fallthru
        _
    $region24: #{acblock_forward.1} parent=5 // pred_fallthru
      _
    %p158 = scmp.le.s32.totalorder 1, %s9
    %p159 = scmp.lt.s32.totalorder %s9, 3
    %p160 = pnand %p158, %p159
    %p161 = pneg %p160
    // Predicated region
    $region29: #{acblock_forward.1} parent=5 // pred_check
      _
    $region30: #{acblock_forward.1} parent=5 // pred_check_branch
      %163 = sbr.rel (%p160) target = $region32
    $region31: #{acblock_forward.1} parent=5 // pred_region
      %s164 = ssub.s32 %s9, 1
      %s165 = smul.u32 16, %s19
      %p166 = scmp.lt.s32.totalorder %s18, 1
      %s167 = scalar_select %p166, %s18, 1
      %p168 = scmp.lt.s32.totalorder %s165, 15
      %s169 = scalar_select %p168, %s165, 15
      %s170 = smul.addr %s169, 2
      %s171 = smul.addr %s167, 32
      %s172 = sadd.s32 %s170, %s171
      %s173 = smul.addr %s172, 4
      %s174 = scalar_lea.vmem %s0, %s173
      %p175 = pneg %p49
      %p176 = pneg %p46
      %p177 = pneg %p70
      %p178 = pneg %p67
      %p179 = pneg %p91
      %p180 = pneg %p88
      %p181 = pneg %p119
      %p182 = pneg %p116
      %s183 = smul.u32 16, %s19
      %p184 = scmp.lt.s32.totalorder %s18, 1
      %s185 = scalar_select %p184, %s18, 1
      %p186 = scmp.lt.s32.totalorder %s183, 15
      %s187 = scalar_select %p186, %s183, 15
      %s188 = smul.addr %s187, 2
      %s189 = smul.addr %s185, 32
      %s190 = sadd.s32 %s188, %s189
      %s191 = smul.addr %s190, 4
      %s192 = scalar_lea.vmem %s3, %s191
      %s193 = smul.u32 16, %s19
      %p194 = scmp.lt.s32.totalorder %s18, 1
      %s195 = scalar_select %p194, %s18, 1
      %p196 = scmp.lt.s32.totalorder %s193, 15
      %s197 = scalar_select %p196, %s193, 15
      %s198 = smul.addr %s197, 2
      %s199 = smul.addr %s195, 32
      %s200 = sadd.s32 %s198, %s199
      %s201 = smul.addr %s200, 4
      %s202 = scalar_lea.vmem %s0, %s201
      %s203 = smul.u32 16, %s19
      %s204 = smul.u32 16, %s19
      %p205 = scmp.lt.s32.totalorder %s18, 1
      %s206 = scalar_select %p205, %s18, 1
      %p207 = scmp.lt.s32.totalorder %s204, 15
      %s208 = scalar_select %p207, %s204, 15
      %s209 = smul.addr %s208, 2
      %s210 = smul.addr %s206, 32
      %s211 = sadd.s32 %s209, %s210
      %s212 = smul.addr %s211, 4
      %s213 = scalar_lea.vmem %s3, %s212
      %s214 = smul.u32 16, %s19
      %v216 = vld [vmem:[%s202] sm:$0xf]
      %v217 = vld [vmem:[%s202 + $0x4] sm:$0xf]
      %v218 = vld [vmem:[%s202 + $0x8] sm:$0xf]
      %v219 = vld [vmem:[%s202 + $0xc] sm:$0xf]
      %v220 = vld [vmem:[%s202 + $0x10] sm:$0xf]
      %v221 = vld [vmem:[%s202 + $0x14] sm:$0xf]
      %v222 = vld [vmem:[%s202 + $0x18] sm:$0xf]
      %v223 = vld [vmem:[%s202 + $0x1c] sm:$0xf]
      %v224 = vld [vmem:[%s202 + $0x20] sm:$0xf]
      %v225 = vld [vmem:[%s202 + $0x24] sm:$0xf]
      %v226 = vld [vmem:[%s202 + $0x28] sm:$0xf]
      %v227 = vld [vmem:[%s202 + $0x2c] sm:$0xf]
      %v228 = vld [vmem:[%s202 + $0x30] sm:$0xf]
      %v229 = vld [vmem:[%s202 + $0x34] sm:$0xf]
      %v230 = vld [vmem:[%s202 + $0x38] sm:$0xf]
      %v231 = vld [vmem:[%s202 + $0x3c] sm:$0xf]
      %v232 = vld [vmem:[%s202 + $0x40] sm:$0xf]
      %v233 = vld [vmem:[%s202 + $0x44] sm:$0xf]
      %v234 = vld [vmem:[%s202 + $0x48] sm:$0xf]
      %v235 = vld [vmem:[%s202 + $0x4c] sm:$0xf]
      %v236 = vld [vmem:[%s202 + $0x50] sm:$0xf]
      %v237 = vld [vmem:[%s202 + $0x54] sm:$0xf]
      %v238 = vld [vmem:[%s202 + $0x58] sm:$0xf]
      %v239 = vld [vmem:[%s202 + $0x5c] sm:$0xf]
      %v240 = vld [vmem:[%s202 + $0x60] sm:$0xf]
      %v241 = vld [vmem:[%s202 + $0x64] sm:$0xf]
      %v242 = vld [vmem:[%s202 + $0x68] sm:$0xf]
      %v243 = vld [vmem:[%s202 + $0x6c] sm:$0xf]
      %v244 = vld [vmem:[%s202 + $0x70] sm:$0xf]
      %v245 = vld [vmem:[%s202 + $0x74] sm:$0xf]
      %v246 = vld [vmem:[%s202 + $0x78] sm:$0xf]
      %v247 = vld [vmem:[%s202 + $0x7c] sm:$0xf]
      %v248 = vld [vmem:[%s1] sm:$0xf]
      %v249 = vld [vmem:[%s1 + $0x4] sm:$0xf]
      %v250 = vld [vmem:[%s1 + $0x8] sm:$0xf]
      %v251 = vld [vmem:[%s1 + $0xc] sm:$0xf]
      %v252 = vld [vmem:[%s1 + $0x10] sm:$0xf]
      %v253 = vld [vmem:[%s1 + $0x14] sm:$0xf]
      %v254 = vld [vmem:[%s1 + $0x18] sm:$0xf]
      %v255 = vld [vmem:[%s1 + $0x1c] sm:$0xf]
      %v256 = vld [vmem:[%s1 + $0x20] sm:$0xf]
      %v257 = vld [vmem:[%s1 + $0x24] sm:$0xf]
      %v258 = vld [vmem:[%s1 + $0x28] sm:$0xf]
      %v259 = vld [vmem:[%s1 + $0x2c] sm:$0xf]
      %v260 = vld [vmem:[%s1 + $0x30] sm:$0xf]
      %v261 = vld [vmem:[%s1 + $0x34] sm:$0xf]
      %v262 = vld [vmem:[%s1 + $0x38] sm:$0xf]
      %v263 = vld [vmem:[%s1 + $0x3c] sm:$0xf]
      %v264 = vld [vmem:[%s2] sm:$0x1]
      %v266 = vlaneseq
      %v267 = vshrl.u32 %v266, 7
      %v268 = vsub.s32 0, %v267
      %v269 = vrot.slane %v264, %v268
      %v303 = vunpack.c.l.b16 %v216
      %v304 = vunpack.c.l.b16 %v217
      %v305 = vunpack.c.l.b16 %v218
      %v306 = vunpack.c.l.b16 %v219
      %v307 = vunpack.c.l.b16 %v220
      %v308 = vunpack.c.l.b16 %v221
      %v309 = vunpack.c.l.b16 %v222
      %v310 = vunpack.c.l.b16 %v223
      %v311 = vunpack.c.l.b16 %v224
      %v312 = vunpack.c.l.b16 %v225
      %v313 = vunpack.c.l.b16 %v226
      %v314 = vunpack.c.l.b16 %v227
      %v315 = vunpack.c.l.b16 %v228
      %v316 = vunpack.c.l.b16 %v229
      %v317 = vunpack.c.l.b16 %v230
      %v318 = vunpack.c.l.b16 %v231
      %v319 = vunpack.c.l.b16 %v232
      %v320 = vunpack.c.l.b16 %v233
      %v321 = vunpack.c.l.b16 %v234
      %v322 = vunpack.c.l.b16 %v235
      %v323 = vunpack.c.l.b16 %v236
      %v324 = vunpack.c.l.b16 %v237
      %v325 = vunpack.c.l.b16 %v238
      %v326 = vunpack.c.l.b16 %v239
      %v327 = vunpack.c.l.b16 %v240
      %v328 = vunpack.c.l.b16 %v241
      %v329 = vunpack.c.l.b16 %v242
      %v330 = vunpack.c.l.b16 %v243
      %v331 = vunpack.c.l.b16 %v244
      %v332 = vunpack.c.l.b16 %v245
      %v333 = vunpack.c.l.b16 %v246
      %v334 = vunpack.c.l.b16 %v247
      %v335 = vpack.c.b16 %v304, %v303
      %v336 = vpack.c.b16 %v306, %v305
      %v337 = vpack.c.b16 %v308, %v307
      %v338 = vpack.c.b16 %v310, %v309
      %v339 = vpack.c.b16 %v312, %v311
      %v340 = vpack.c.b16 %v314, %v313
      %v341 = vpack.c.b16 %v316, %v315
      %v342 = vpack.c.b16 %v318, %v317
      %v343 = vpack.c.b16 %v320, %v319
      %v344 = vpack.c.b16 %v322, %v321
      %v345 = vpack.c.b16 %v324, %v323
      %v346 = vpack.c.b16 %v326, %v325
      %v347 = vpack.c.b16 %v328, %v327
      %v348 = vpack.c.b16 %v330, %v329
      %v349 = vpack.c.b16 %v332, %v331
      %v350 = vpack.c.b16 %v334, %v333
      %v383 = vunpack.c.l.b16 %v248
      %v384 = vunpack.c.l.b16 %v249
      %v385 = vunpack.c.l.b16 %v250
      %v386 = vunpack.c.l.b16 %v251
      %v387 = vunpack.c.l.b16 %v252
      %v388 = vunpack.c.l.b16 %v253
      %v389 = vunpack.c.l.b16 %v254
      %v390 = vunpack.c.l.b16 %v255
      %v391 = vunpack.c.l.b16 %v256
      %v392 = vunpack.c.l.b16 %v257
      %v393 = vunpack.c.l.b16 %v258
      %v394 = vunpack.c.l.b16 %v259
      %v395 = vunpack.c.l.b16 %v260
      %v396 = vunpack.c.l.b16 %v261
      %v397 = vunpack.c.l.b16 %v262
      %v398 = vunpack.c.l.b16 %v263
      %v399 = vpack.c.b16 %v384, %v383
      %v400 = vpack.c.b16 %v386, %v385
      %v401 = vpack.c.b16 %v388, %v387
      %v402 = vpack.c.b16 %v390, %v389
      %v403 = vpack.c.b16 %v392, %v391
      %v404 = vpack.c.b16 %v394, %v393
      %v405 = vpack.c.b16 %v396, %v395
      %v406 = vpack.c.b16 %v398, %v397
      %415 = vmatprep.subr.bf16.mxu0 0
      %416 = vmatpush1.bf16.msra.mxu0 %v399
      %417 = vmatprep.subr.bf16.mxu0 0
      %418 = vmatpush1.bf16.msra.mxu0 %v400
      %419 = vmatprep.subr.bf16.mxu0 0
      %420 = vmatpush1.bf16.msra.mxu0 %v401
      %421 = vmatprep.subr.bf16.mxu0 0
      %422 = vmatpush1.bf16.msra.mxu0 %v402
      %423 = vmatprep.subr.bf16.mxu0 0
      %424 = vmatpush1.bf16.msra.mxu0 %v403
      %425 = vmatprep.subr.bf16.mxu0 0
      %426 = vmatpush1.bf16.msra.mxu0 %v404
      %427 = vmatprep.subr.bf16.mxu0 0
      %428 = vmatpush1.bf16.msra.mxu0 %v405
      %429 = vmatprep.subr.bf16.mxu0 0
      %430 = vmatpush1.bf16.msra.mxu0 %v406
      %431 = vmatprep.subr.bf16.mxu0 0
      %432 = vmatpush1.bf16.msra.mxu0 0
      %433 = vmatprep.subr.bf16.mxu0 0
      %434 = vmatpush1.bf16.msra.mxu0 0
      %435 = vmatprep.subr.bf16.mxu0 0
      %436 = vmatpush1.bf16.msra.mxu0 0
      %437 = vmatprep.subr.bf16.mxu0 0
      %438 = vmatpush1.bf16.msra.mxu0 0
      %439 = vmatprep.subr.bf16.mxu0 0
      %440 = vmatpush1.bf16.msra.mxu0 0
      %441 = vmatprep.subr.bf16.mxu0 0
      %442 = vmatpush1.bf16.msra.mxu0 0
      %443 = vmatprep.subr.bf16.mxu0 0
      %444 = vmatpush1.bf16.msra.mxu0 0
      %445 = vmatprep.subr.bf16.mxu0 0
      %446 = vmatpush1.bf16.msra.mxu0 0
      %447 = vmatprep.mubr.bf16.mxu0 0
      %448 = vmatmul.mubr.bf16.gmra.mrb[0].mxu0 %v335
      %v449 = vpop.f32.mrb[0].mxu0
      %v450 = vadd.f32 %v269, %v449
      %v451 = vpop.f32.mrb[0].mxu0
      %v452 = vpop.f32.mrb[0].mxu0
      %v453 = vadd.f32 %v269, %v452
      %v454 = vpop.f32.mrb[0].mxu0
      %455 = vmatprep.mubr.bf16.mxu0 0
      %456 = vmatmul.mubr.bf16.gmra.mrb[0].mxu0 %v336
      %v457 = vpop.f32.mrb[0].mxu0
      %v458 = vadd.f32 %v269, %v457
      %v459 = vpop.f32.mrb[0].mxu0
      %v460 = vpop.f32.mrb[0].mxu0
      %v461 = vadd.f32 %v269, %v460
      %v462 = vpop.f32.mrb[0].mxu0
      %463 = vmatprep.mubr.bf16.mxu0 0
      %464 = vmatmul.mubr.bf16.gmra.mrb[0].mxu0 %v337
      %v465 = vpop.f32.mrb[0].mxu0
      %v466 = vadd.f32 %v269, %v465
      %v467 = vpop.f32.mrb[0].mxu0
      %v468 = vpop.f32.mrb[0].mxu0
      %v469 = vadd.f32 %v269, %v468
      %v470 = vpop.f32.mrb[0].mxu0
      %471 = vmatprep.mubr.bf16.mxu0 0
      %472 = vmatmul.mubr.bf16.gmra.mrb[0].mxu0 %v338
      %v473 = vpop.f32.mrb[0].mxu0
      %v474 = vadd.f32 %v269, %v473
      %v475 = vpop.f32.mrb[0].mxu0
      %v476 = vpop.f32.mrb[0].mxu0
      %v477 = vadd.f32 %v269, %v476
      %v478 = vpop.f32.mrb[0].mxu0
      %479 = vmatprep.mubr.bf16.mxu0 0
      %480 = vmatmul.mubr.bf16.gmra.mrb[0].mxu0 %v339
      %v481 = vpop.f32.mrb[0].mxu0
      %v482 = vadd.f32 %v269, %v481
      %v483 = vpop.f32.mrb[0].mxu0
      %v484 = vpop.f32.mrb[0].mxu0
      %v485 = vadd.f32 %v269, %v484
      %v486 = vpop.f32.mrb[0].mxu0
      %487 = vmatprep.mubr.bf16.mxu0 0
      %488 = vmatmul.mubr.bf16.gmra.mrb[0].mxu0 %v340
      %v489 = vpop.f32.mrb[0].mxu0
      %v490 = vadd.f32 %v269, %v489
      %v491 = vpop.f32.mrb[0].mxu0
      %v492 = vpop.f32.mrb[0].mxu0
      %v493 = vadd.f32 %v269, %v492
      %v494 = vpop.f32.mrb[0].mxu0
      %495 = vmatprep.mubr.bf16.mxu0 0
      %496 = vmatmul.mubr.bf16.gmra.mrb[0].mxu0 %v341
      %v497 = vpop.f32.mrb[0].mxu0
      %v498 = vadd.f32 %v269, %v497
      %v499 = vpop.f32.mrb[0].mxu0
      %v500 = vpop.f32.mrb[0].mxu0
      %v501 = vadd.f32 %v269, %v500
      %v502 = vpop.f32.mrb[0].mxu0
      %503 = vmatprep.mubr.bf16.mxu0 0
      %504 = vmatmul.mubr.bf16.gmra.mrb[0].mxu0 %v342
      %v505 = vpop.f32.mrb[0].mxu0
      %v506 = vadd.f32 %v269, %v505
      %v507 = vpop.f32.mrb[0].mxu0
      %v508 = vpop.f32.mrb[0].mxu0
      %v509 = vadd.f32 %v269, %v508
      %v510 = vpop.f32.mrb[0].mxu0
      %511 = vmatprep.mubr.bf16.mxu0 0
      %512 = vmatmul.mubr.bf16.gmra.mrb[0].mxu0 %v343
      %v513 = vpop.f32.mrb[0].mxu0
      %v514 = vadd.f32 %v269, %v513
      %v515 = vpop.f32.mrb[0].mxu0
      %v516 = vpop.f32.mrb[0].mxu0
      %v517 = vadd.f32 %v269, %v516
      %v518 = vpop.f32.mrb[0].mxu0
      %519 = vmatprep.mubr.bf16.mxu0 0
      %520 = vmatmul.mubr.bf16.gmra.mrb[0].mxu0 %v344
      %v521 = vpop.f32.mrb[0].mxu0
      %v522 = vadd.f32 %v269, %v521
      %v523 = vpop.f32.mrb[0].mxu0
      %v524 = vpop.f32.mrb[0].mxu0
      %v525 = vadd.f32 %v269, %v524
      %v526 = vpop.f32.mrb[0].mxu0
      %527 = vmatprep.mubr.bf16.mxu0 0
      %528 = vmatmul.mubr.bf16.gmra.mrb[0].mxu0 %v345
      %v529 = vpop.f32.mrb[0].mxu0
      %v530 = vadd.f32 %v269, %v529
      %v531 = vpop.f32.mrb[0].mxu0
      %v532 = vpop.f32.mrb[0].mxu0
      %v533 = vadd.f32 %v269, %v532
      %v534 = vpop.f32.mrb[0].mxu0
      %535 = vmatprep.mubr.bf16.mxu0 0
      %536 = vmatmul.mubr.bf16.gmra.mrb[0].mxu0 %v346
      %v537 = vpop.f32.mrb[0].mxu0
      %v538 = vadd.f32 %v269, %v537
      %v539 = vpop.f32.mrb[0].mxu0
      %v540 = vpop.f32.mrb[0].mxu0
      %v541 = vadd.f32 %v269, %v540
      %v542 = vpop.f32.mrb[0].mxu0
      %543 = vmatprep.mubr.bf16.mxu0 0
      %544 = vmatmul.mubr.bf16.gmra.mrb[0].mxu0 %v347
      %v545 = vpop.f32.mrb[0].mxu0
      %v546 = vadd.f32 %v269, %v545
      %v547 = vpop.f32.mrb[0].mxu0
      %v548 = vpop.f32.mrb[0].mxu0
      %v549 = vadd.f32 %v269, %v548
      %v550 = vpop.f32.mrb[0].mxu0
      %551 = vmatprep.mubr.bf16.mxu0 0
      %552 = vmatmul.mubr.bf16.gmra.mrb[0].mxu0 %v348
      %v553 = vpop.f32.mrb[0].mxu0
      %v554 = vadd.f32 %v269, %v553
      %v555 = vpop.f32.mrb[0].mxu0
      %v556 = vpop.f32.mrb[0].mxu0
      %v557 = vadd.f32 %v269, %v556
      %v558 = vpop.f32.mrb[0].mxu0
      %559 = vmatprep.mubr.bf16.mxu0 0
      %560 = vmatmul.mubr.bf16.gmra.mrb[0].mxu0 %v349
      %v561 = vpop.f32.mrb[0].mxu0
      %v562 = vadd.f32 %v269, %v561
      %v563 = vpop.f32.mrb[0].mxu0
      %v564 = vpop.f32.mrb[0].mxu0
      %v565 = vadd.f32 %v269, %v564
      %v566 = vpop.f32.mrb[0].mxu0
      %567 = vmatprep.mubr.bf16.mxu0 0
      %568 = vmatmul.mubr.bf16.gmra.mrb[0].mxu0 %v350
      %v569 = vpop.f32.mrb[0].mxu0
      %v570 = vadd.f32 %v269, %v569
      %v571 = vpop.f32.mrb[0].mxu0
      %v572 = vpop.f32.mrb[0].mxu0
      %v573 = vadd.f32 %v269, %v572
      %v574 = vpop.f32.mrb[0].mxu0
      %575 = vdwg.mxu0
      %v576 = vmax.f32 %v450, 0.0
      %v577 = vmax.f32 %v453, 0.0
      %v578 = vmax.f32 %v458, 0.0
      %v579 = vmax.f32 %v461, 0.0
      %v580 = vmax.f32 %v466, 0.0
      %v581 = vmax.f32 %v469, 0.0
      %v582 = vmax.f32 %v474, 0.0
      %v583 = vmax.f32 %v477, 0.0
      %v584 = vmax.f32 %v482, 0.0
      %v585 = vmax.f32 %v485, 0.0
      %v586 = vmax.f32 %v490, 0.0
      %v587 = vmax.f32 %v493, 0.0
      %v588 = vmax.f32 %v498, 0.0
      %v589 = vmax.f32 %v501, 0.0
      %v590 = vmax.f32 %v506, 0.0
      %v591 = vmax.f32 %v509, 0.0
      %v592 = vmax.f32 %v514, 0.0
      %v593 = vmax.f32 %v517, 0.0
      %v594 = vmax.f32 %v522, 0.0
      %v595 = vmax.f32 %v525, 0.0
      %v596 = vmax.f32 %v530, 0.0
      %v597 = vmax.f32 %v533, 0.0
      %v598 = vmax.f32 %v538, 0.0
      %v599 = vmax.f32 %v541, 0.0
      %v600 = vmax.f32 %v546, 0.0
      %v601 = vmax.f32 %v549, 0.0
      %v602 = vmax.f32 %v554, 0.0
      %v603 = vmax.f32 %v557, 0.0
      %v604 = vmax.f32 %v562, 0.0
      %v605 = vmax.f32 %v565, 0.0
      %v606 = vmax.f32 %v570, 0.0
      %v607 = vmax.f32 %v573, 0.0
      %v608 = vpack.c.bf16 %v577, %v576
      %v609 = vpack.c.bf16 %v579, %v578
      %v610 = vpack.c.bf16 %v581, %v580
      %v611 = vpack.c.bf16 %v583, %v582
      %v612 = vpack.c.bf16 %v585, %v584
      %v613 = vpack.c.bf16 %v587, %v586
      %v614 = vpack.c.bf16 %v589, %v588
      %v615 = vpack.c.bf16 %v591, %v590
      %v616 = vpack.c.bf16 %v593, %v592
      %v617 = vpack.c.bf16 %v595, %v594
      %v618 = vpack.c.bf16 %v597, %v596
      %v619 = vpack.c.bf16 %v599, %v598
      %v620 = vpack.c.bf16 %v601, %v600
      %v621 = vpack.c.bf16 %v603, %v602
      %v622 = vpack.c.bf16 %v605, %v604
      %v623 = vpack.c.bf16 %v607, %v606
      %v640 = vunpack.c.l.b16 %v608
      %v641 = vunpack.c.h.b16 %v608
      %v642 = vunpack.c.l.b16 %v609
      %v643 = vunpack.c.h.b16 %v609
      %v644 = vunpack.c.l.b16 %v610
      %v645 = vunpack.c.h.b16 %v610
      %v646 = vunpack.c.l.b16 %v611
      %v647 = vunpack.c.h.b16 %v611
      %v648 = vunpack.c.l.b16 %v612
      %v649 = vunpack.c.h.b16 %v612
      %v650 = vunpack.c.l.b16 %v613
      %v651 = vunpack.c.h.b16 %v613
      %v652 = vunpack.c.l.b16 %v614
      %v653 = vunpack.c.h.b16 %v614
      %v654 = vunpack.c.l.b16 %v615
      %v655 = vunpack.c.h.b16 %v615
      %v656 = vunpack.c.l.b16 %v616
      %v657 = vunpack.c.h.b16 %v616
      %v658 = vunpack.c.l.b16 %v617
      %v659 = vunpack.c.h.b16 %v617
      %v660 = vunpack.c.l.b16 %v618
      %v661 = vunpack.c.h.b16 %v618
      %v662 = vunpack.c.l.b16 %v619
      %v663 = vunpack.c.h.b16 %v619
      %v664 = vunpack.c.l.b16 %v620
      %v665 = vunpack.c.h.b16 %v620
      %v666 = vunpack.c.l.b16 %v621
      %v667 = vunpack.c.h.b16 %v621
      %v668 = vunpack.c.l.b16 %v622
      %v669 = vunpack.c.h.b16 %v622
      %v670 = vunpack.c.l.b16 %v623
      %v671 = vunpack.c.h.b16 %v623
      %v672 = vpack.c.b16 %v640, %v640
      %v673 = vpack.c.b16 %v641, %v641
      %v674 = vpack.c.b16 %v642, %v642
      %v675 = vpack.c.b16 %v643, %v643
      %v676 = vpack.c.b16 %v644, %v644
      %v677 = vpack.c.b16 %v645, %v645
      %v678 = vpack.c.b16 %v646, %v646
      %v679 = vpack.c.b16 %v647, %v647
      %v680 = vpack.c.b16 %v648, %v648
      %v681 = vpack.c.b16 %v649, %v649
      %v682 = vpack.c.b16 %v650, %v650
      %v683 = vpack.c.b16 %v651, %v651
      %v684 = vpack.c.b16 %v652, %v652
      %v685 = vpack.c.b16 %v653, %v653
      %v686 = vpack.c.b16 %v654, %v654
      %v687 = vpack.c.b16 %v655, %v655
      %v688 = vpack.c.b16 %v656, %v656
      %v689 = vpack.c.b16 %v657, %v657
      %v690 = vpack.c.b16 %v658, %v658
      %v691 = vpack.c.b16 %v659, %v659
      %v692 = vpack.c.b16 %v660, %v660
      %v693 = vpack.c.b16 %v661, %v661
      %v694 = vpack.c.b16 %v662, %v662
      %v695 = vpack.c.b16 %v663, %v663
      %v696 = vpack.c.b16 %v664, %v664
      %v697 = vpack.c.b16 %v665, %v665
      %v698 = vpack.c.b16 %v666, %v666
      %v699 = vpack.c.b16 %v667, %v667
      %v700 = vpack.c.b16 %v668, %v668
      %v701 = vpack.c.b16 %v669, %v669
      %v702 = vpack.c.b16 %v670, %v670
      %v703 = vpack.c.b16 %v671, %v671
      %736 = vst [vmem:[%s213] sm:$0xf] %v672
      %737 = vst [vmem:[%s213 + $0x4] sm:$0xf] %v673
      %738 = vst [vmem:[%s213 + $0x8] sm:$0xf] %v674
      %739 = vst [vmem:[%s213 + $0xc] sm:$0xf] %v675
      %740 = vst [vmem:[%s213 + $0x10] sm:$0xf] %v676
      %741 = vst [vmem:[%s213 + $0x14] sm:$0xf] %v677
      %742 = vst [vmem:[%s213 + $0x18] sm:$0xf] %v678
      %743 = vst [vmem:[%s213 + $0x1c] sm:$0xf] %v679
      %744 = vst [vmem:[%s213 + $0x20] sm:$0xf] %v680
      %745 = vst [vmem:[%s213 + $0x24] sm:$0xf] %v681
      %746 = vst [vmem:[%s213 + $0x28] sm:$0xf] %v682
      %747 = vst [vmem:[%s213 + $0x2c] sm:$0xf] %v683
      %748 = vst [vmem:[%s213 + $0x30] sm:$0xf] %v684
      %749 = vst [vmem:[%s213 + $0x34] sm:$0xf] %v685
      %750 = vst [vmem:[%s213 + $0x38] sm:$0xf] %v686
      %751 = vst [vmem:[%s213 + $0x3c] sm:$0xf] %v687
      %752 = vst [vmem:[%s213 + $0x40] sm:$0xf] %v688
      %753 = vst [vmem:[%s213 + $0x44] sm:$0xf] %v689
      %754 = vst [vmem:[%s213 + $0x48] sm:$0xf] %v690
      %755 = vst [vmem:[%s213 + $0x4c] sm:$0xf] %v691
      %756 = vst [vmem:[%s213 + $0x50] sm:$0xf] %v692
      %757 = vst [vmem:[%s213 + $0x54] sm:$0xf] %v693
      %758 = vst [vmem:[%s213 + $0x58] sm:$0xf] %v694
      %759 = vst [vmem:[%s213 + $0x5c] sm:$0xf] %v695
      %760 = vst [vmem:[%s213 + $0x60] sm:$0xf] %v696
      %761 = vst [vmem:[%s213 + $0x64] sm:$0xf] %v697
      %762 = vst [vmem:[%s213 + $0x68] sm:$0xf] %v698
      %763 = vst [vmem:[%s213 + $0x6c] sm:$0xf] %v699
      %764 = vst [vmem:[%s213 + $0x70] sm:$0xf] %v700
      %765 = vst [vmem:[%s213 + $0x74] sm:$0xf] %v701
      %766 = vst [vmem:[%s213 + $0x78] sm:$0xf] %v702
      %767 = vst [vmem:[%s213 + $0x7c] sm:$0xf] %v703
      %s768 = smul.u32 16, %s19
      %p769 = scmp.lt.s32.totalorder %s18, 1
      %s770 = scalar_select %p769, %s18, 1
      %p771 = scmp.lt.s32.totalorder %s768, 15
      %s772 = scalar_select %p771, %s768, 15
      %s773 = smul.addr %s772, 2
      %s774 = smul.addr %s770, 32
      %s775 = sadd.s32 %s773, %s774
      %s776 = smul.addr %s775, 4
      %s777 = scalar_lea.vmem %s3, %s776
      // Predicated region
      $region33: #{acblock_forward.1} parent=31 // pred_check
        %p778 = pneg %p116
      $region34: #{acblock_forward.1} parent=31 // pred_check_branch
        %780 = sbr.rel (%p778) target = $region36
      $region35: #{acblock_forward.1} parent=31 // pred_region
        %s781 = smul.u32 16, %s19
      $region36: #{acblock_forward.1} parent=31 // pred_fallthru
        _
    $region32: #{acblock_forward.1} parent=5 // pred_fallthru
      _
    %p782 = scmp.le.s32.totalorder 2, %s9
    // Predicated region
    $region37: #{acblock_forward.1} parent=5 // pred_check
      %p783 = pneg %p782
    $region38: #{acblock_forward.1} parent=5 // pred_check_branch
      %785 = sbr.rel (%p783) target = $region40
    $region39: #{acblock_forward.1} parent=5 // pred_region
      %s786 = ssub.s32 %s9, 2
      // Predicated region
      $region41: #{acblock_forward.1} parent=39 // pred_check
        %p787 = pneg %p122
      $region42: #{acblock_forward.1} parent=39 // pred_check_branch
        %789 = sbr.rel (%p787) target = $region44
      $region43: #{acblock_forward.1} parent=39 // pred_region
        %s790 = smul.u32 16, %s21
        %p791 = scmp.lt.s32.totalorder %s20, 1
        %s792 = scalar_select %p791, %s20, 1
        %p793 = scmp.lt.s32.totalorder %s790, 15
        %s794 = scalar_select %p793, %s790, 15
        %s795 = smul.addr %s794, 2
        %s796 = smul.addr %s792, 32
        %s797 = sadd.s32 %s795, %s796
        %s798 = smul.addr %s797, 4
        %s799 = scalar_lea.vmem %s3, %s798
      $region44: #{acblock_forward.1} parent=39 // pred_fallthru
        _
    $region40: #{acblock_forward.1} parent=5 // pred_fallthru
      _
  $region6: #{acblock_forward.1} parent=0 // loop_footer
    %s13 = sadd.s32 1, %s9
  $region7: #{acblock_forward.1} parent=0 // loop_footer_branch
    %8 = sbr.rel target = $region3
  $region8: #{acblock_forward.1} parent=0 // loop_exit
    _

</llo_original>
